<compile_context>
chip_gen: v7x
topology: tpu7x:2x2x1
jax: 0.10.0
libtpu: 0.0.40
codegen_flags: <defaults>
</compile_context>

<pallas_src>
import functools

import jax
import jax.numpy as jnp
from jax.experimental import pallas as pl
from jax.experimental.pallas import tpu as pltpu


def _debias_kernel(hid_ref, lab_ref, dl_ref, gv_ref, w_ref, b_ref,
                   nll_out, cnt_out, orth_out,
                   m_scr, l_scr, lbl_scr,
                   *, orth_loss_ver, tile_v):
    v = pl.program_id(1)
    n_v = pl.num_programs(1)

    @pl.when(v == 0)
    def _():
        m_scr[...] = jnp.full_like(m_scr, -jnp.inf)
        l_scr[...] = jnp.zeros_like(l_scr)
        lbl_scr[...] = jnp.zeros_like(lbl_scr)

    h = hid_ref[0]                      # (S, H) bf16 (resident across the v axis)
    labels = lab_ref[0]                 # (S, 1) int32, -100 = ignore

    # ---- MLM head, one vocab tile: logits = h @ W[:, v*T:(v+1)*T] + b_tile
    logits = jnp.dot(h, w_ref[...],
                     preferred_element_type=jnp.float32) + b_ref[...]        # (S, T) f32

    # Online (streaming) log-sum-exp over vocab tiles, running stats in f32.
    m_prev = m_scr[...]                                                      # (S, 1)
    m_new = jnp.maximum(m_prev, jnp.max(logits, axis=-1, keepdims=True))     # (S, 1)
    l_scr[...] = (l_scr[...] * jnp.exp(m_prev - m_new)
                  + jnp.sum(jnp.exp(logits - m_new), axis=-1, keepdims=True))
    m_scr[...] = m_new

    # Gather the label logit for labels falling inside this vocab tile.
    vocab_iota = jax.lax.broadcasted_iota(jnp.int32, logits.shape, 1) + v * tile_v
    onehot = vocab_iota == labels                                            # (S, T) bool
    lbl_scr[...] += jnp.sum(jnp.where(onehot, logits, 0.0),
                            axis=-1, keepdims=True)                          # (S, 1)

    @pl.when(v == n_v - 1)
    def _():
        # Masked cross-entropy partials for this batch element.
        lse = m_scr[...] + jnp.log(l_scr[...])                               # (S, 1)
        nll = lse - lbl_scr[...]                                             # (S, 1)
        valid = (labels != -100).astype(jnp.float32)                         # (S, 1)
        nll_sum = jnp.sum(nll * valid)
        cnt = jnp.sum(valid)

        # Debias orthogonal loss: sum f(dl * (h @ gv))  (VPU mul + lane reduce).
        dl = dl_ref[0]                                                       # (S, 1) f32
        proj = jnp.sum(h.astype(jnp.float32) * gv_ref[...],
                       axis=-1, keepdims=True)                               # (S, 1)
        pd = dl * proj
        if orth_loss_ver == "abs":
            orth = jnp.sum(jnp.abs(pd))
        else:  # 'square'
            orth = jnp.sum(jnp.square(pd))

        nll_out[...] = jnp.full(nll_out.shape, nll_sum, jnp.float32)
        cnt_out[...] = jnp.full(cnt_out.shape, cnt, jnp.float32)
        orth_out[...] = jnp.full(orth_out.shape, orth, jnp.float32)


def _pick_tile_v(v):
    for t in (2048, 1024, 512, 256, 128):
        if v % t == 0:
            return t
    return None


def bert_debias_losses(final_hidden, labels, debias_label_ids, gender_vector,
                       w_dec, b_dec, *, orth_loss_ver="abs", tile_v=None):
    """Returns (mlm_loss, orthogonal_loss) like BERT_debias.forward with debias_label_ids."""
    B, S, H = final_hidden.shape
    V = w_dec.shape[1]

    if tile_v is None:
        tile_v = _pick_tile_v(V)
        if tile_v is None:
            tile_v = 2048 if V >= 2048 else ((V + 127) // 128) * 128
    assert tile_v % 128 == 0, "tile_v must be a multiple of 128"

    # Pad vocab to a multiple of tile_v; padded columns get bias -1e30 so they
    # contribute ~0 to the softmax and never match a real label id.
    v_pad = ((V + tile_v - 1) // tile_v) * tile_v
    pad = v_pad - V

    w = w_dec.astype(jnp.bfloat16)                       # (H, V) bf16
    b = b_dec.reshape(1, V).astype(jnp.float32)          # (1, V) f32
    if pad:
        w = jnp.pad(w, ((0, 0), (0, pad)))
        b = jnp.pad(b, ((0, 0), (0, pad)), constant_values=-1e30)

    hid = final_hidden.astype(jnp.bfloat16)              # (B, S, H) bf16
    labels3 = labels.reshape(B, S, 1).astype(jnp.int32)
    dl3 = debias_label_ids.reshape(B, S, 1).astype(jnp.float32)
    gv = gender_vector.reshape(1, H).astype(jnp.float32)

    n_v = v_pad // tile_v
    kernel = functools.partial(_debias_kernel,
                               orth_loss_ver=orth_loss_ver, tile_v=tile_v)

    nll_s, cnt_s, orth_s = pl.pallas_call(
        kernel,
        out_shape=(jax.ShapeDtypeStruct((B, 1, 128), jnp.float32),
                   jax.ShapeDtypeStruct((B, 1, 128), jnp.float32),
                   jax.ShapeDtypeStruct((B, 1, 128), jnp.float32)),
        grid_spec=pltpu.PrefetchScalarGridSpec(
            num_scalar_prefetch=0,
            grid=(B, n_v),                                # vocab (reduction) axis last
            in_specs=[
                pl.BlockSpec((1, S, H), lambda bb, vv: (bb, 0, 0)),   # final_hidden (bf16)
                pl.BlockSpec((1, S, 1), lambda bb, vv: (bb, 0, 0)),   # labels
                pl.BlockSpec((1, S, 1), lambda bb, vv: (bb, 0, 0)),   # debias_label_ids
                pl.BlockSpec((1, H),    lambda bb, vv: (0, 0)),       # gender_vector
                pl.BlockSpec((H, tile_v), lambda bb, vv: (0, vv)),    # decoder weight tile (bf16)
                pl.BlockSpec((1, tile_v), lambda bb, vv: (0, vv)),    # decoder bias tile
            ],
            out_specs=[
                pl.BlockSpec((1, 1, 128), lambda bb, vv: (bb, 0, 0)),
                pl.BlockSpec((1, 1, 128), lambda bb, vv: (bb, 0, 0)),
                pl.BlockSpec((1, 1, 128), lambda bb, vv: (bb, 0, 0)),
            ],
            scratch_shapes=[pltpu.VMEM((S, 1), jnp.float32),   # running max
                            pltpu.VMEM((S, 1), jnp.float32),   # running sum
                            pltpu.VMEM((S, 1), jnp.float32)],  # label logit
        ),
        compiler_params=pltpu.CompilerParams(
            dimension_semantics=("parallel", "arbitrary"),
            vmem_limit_bytes=48 * 1024 * 1024,
        ),
    )(hid, labels3, dl3, gv, w, b)

    nll_total = jnp.sum(nll_s[:, 0, 0])
    cnt_total = jnp.sum(cnt_s[:, 0, 0])
    mlm = nll_total / jnp.maximum(cnt_total, 1.0)
    orth = jnp.sum(orth_s[:, 0, 0])
    return mlm, orth


def _reference(final_hidden, labels, debias_label_ids, gender_vector, w_dec, b_dec, ver):
    # Same bf16 rounding of hidden/weights as the kernel, f32 accumulation.
    fh = final_hidden.astype(jnp.bfloat16).astype(jnp.float32)
    w = w_dec.astype(jnp.bfloat16).astype(jnp.float32)
    logits = fh @ w + b_dec.reshape(1, 1, -1)
    logp = jax.nn.log_softmax(logits, axis=-1)
    valid = labels != -100
    safe = jnp.where(valid, labels, 0)
    nll = -jnp.take_along_axis(logp, safe[..., None], axis=-1)[..., 0]
    mlm = jnp.sum(nll * valid) / jnp.maximum(jnp.sum(valid.astype(jnp.float32)), 1.0)
    proj = jnp.sum(fh * gender_vector.reshape(1, 1, -1), axis=-1)   # (B, S)
    pd = debias_label_ids * proj
    orth = jnp.sum(jnp.abs(pd)) if ver == "abs" else jnp.sum(jnp.square(pd))
    return mlm, orth


if __name__ == "__main__":
    key = jax.random.PRNGKey(0)
    B, S, H, V = 2, 16, 64, 256
    TILE_V = 128   # -> 2 vocab tiles, exercises the streaming log-sum-exp

    k_emb, k_ids, k_mask, k_dl, k_gv, k_w = jax.random.split(key, 6)

    # Deterministic "model parameters".
    emb_table = jax.random.normal(k_emb, (V, H), dtype=jnp.float32) * 0.1
    w_dec = jax.random.normal(k_w, (H, V), dtype=jnp.float32) * 0.05
    b_dec = jnp.zeros((V,), dtype=jnp.float32)
    gender_vector = jax.random.normal(k_gv, (H,), dtype=jnp.float32)
    gender_vector = gender_vector / jnp.linalg.norm(gender_vector)

    # Inputs.
    input_ids = jax.random.randint(k_ids, (B, S), 0, V, dtype=jnp.int32)
    mask_prob = jax.random.uniform(k_mask, (B, S))
    labels = jnp.where(mask_prob < 0.3, input_ids, -100).astype(jnp.int32)  # MLM-style labels
    debias_label_ids = (jax.random.uniform(k_dl, (B, S)) < 0.5).astype(jnp.float32)

    # TODO(synk): pretrained 12-layer BERT encoder not re-implemented;
    # final_hidden stands in for output.hidden_states[-1] (here: embedding lookup).
    final_hidden = emb_table[input_ids]  # (B, S, H)

    for ver in ("abs", "square"):
        mlm_loss, orth_loss = jax.jit(
            functools.partial(bert_debias_losses, orth_loss_ver=ver, tile_v=TILE_V)
        )(final_hidden, labels, debias_label_ids, gender_vector, w_dec, b_dec)
        jax.block_until_ready((mlm_loss, orth_loss))
        ref_mlm, ref_orth = _reference(final_hidden, labels, debias_label_ids,
                                       gender_vector, w_dec, b_dec, ver)
        assert jnp.allclose(mlm_loss, ref_mlm, rtol=2e-3, atol=2e-3), (mlm_loss, ref_mlm)
        assert jnp.allclose(orth_loss, ref_orth, rtol=2e-3, atol=2e-3), (orth_loss, ref_orth)

    print("KERNEL_OK")
</pallas_src>

<mosaic_0001>
module attributes {stable_mosaic.version = 11 : i64} {
  func.func @_debias_kernel(%arg0: i32, %arg1: i32, %arg2: memref<1x16x64xbf16, #tpu.memory_space<vmem>>, %arg3: memref<1x16x1xi32, #tpu.memory_space<vmem>>, %arg4: memref<1x16x1xf32, #tpu.memory_space<vmem>>, %arg5: memref<1x64xf32, #tpu.memory_space<vmem>>, %arg6: memref<64x128xbf16, #tpu.memory_space<vmem>>, %arg7: memref<1x128xf32, #tpu.memory_space<vmem>>, %arg8: memref<1x1x128xf32, #tpu.memory_space<vmem>>, %arg9: memref<1x1x128xf32, #tpu.memory_space<vmem>>, %arg10: memref<1x1x128xf32, #tpu.memory_space<vmem>>, %arg11: memref<16x1xf32, #tpu.memory_space<vmem>>, %arg12: memref<16x1xf32, #tpu.memory_space<vmem>>, %arg13: memref<16x1xf32, #tpu.memory_space<vmem>>) attributes {dimension_semantics = [#tpu.dimension_semantics<parallel>, #tpu.dimension_semantics<arbitrary>], iteration_bounds = array<i64: 2, 2>, scalar_prefetch = 0 : i64, scratch_operands = 3 : i64, tpu.core_type = #tpu.core_type<tc>, window_params = [{transform_indices = @transform_0, window_bounds = array<i64: 1, 16, 64>}, {transform_indices = @transform_1, window_bounds = array<i64: 1, 16, 1>}, {transform_indices = @transform_2, window_bounds = array<i64: 1, 16, 1>}, {pipeline_mode = #tpu.pipeline_mode<synchronous>, transform_indices = @transform_3, window_bounds = array<i64: 1, 64>}, {transform_indices = @transform_4, window_bounds = array<i64: 64, 128>}, {transform_indices = @transform_5, window_bounds = array<i64: 1, 128>}, {transform_indices = @transform_6, window_bounds = array<i64: 1, 1, 128>}, {transform_indices = @transform_7, window_bounds = array<i64: 1, 1, 128>}, {transform_indices = @transform_8, window_bounds = array<i64: 1, 1, 128>}]} {
    %c0_i32 = arith.constant 0 : i32
    %0 = arith.cmpi eq, %arg1, %c0_i32 : i32
    %1 = arith.extui %0 : i1 to i32
    %c0_i32_0 = arith.constant 0 : i32
    %2 = arith.cmpi ne, %1, %c0_i32_0 : i32
    scf.if %2 {
      %cst_27 = arith.constant 0xFF800000 : f32
      %44 = vector.broadcast %cst_27 : f32 to vector<16x1xf32>
      %c0_28 = arith.constant 0 : index
      %c0_29 = arith.constant 0 : index
      %45 = vector.load %arg11[%c0_28, %c0_29] : memref<16x1xf32, #tpu.memory_space<vmem>>, vector<16x1xf32>
      tpu.vector_store %arg11[%c0_28, %c0_29], %44 {strides = array<i32>} : memref<16x1xf32, #tpu.memory_space<vmem>>, vector<16x1xf32>,
      %cst_30 = arith.constant 0.000000e+00 : f32
      %46 = vector.broadcast %cst_30 : f32 to vector<16x1xf32>
      %c0_31 = arith.constant 0 : index
      %c0_32 = arith.constant 0 : index
      %47 = vector.load %arg12[%c0_31, %c0_32] : memref<16x1xf32, #tpu.memory_space<vmem>>, vector<16x1xf32>
      tpu.vector_store %arg12[%c0_31, %c0_32], %46 {strides = array<i32>} : memref<16x1xf32, #tpu.memory_space<vmem>>, vector<16x1xf32>,
      %cst_33 = arith.constant 0.000000e+00 : f32
      %48 = vector.broadcast %cst_33 : f32 to vector<16x1xf32>
      %c0_34 = arith.constant 0 : index
      %c0_35 = arith.constant 0 : index
      %49 = vector.load %arg13[%c0_34, %c0_35] : memref<16x1xf32, #tpu.memory_space<vmem>>, vector<16x1xf32>
      tpu.vector_store %arg13[%c0_34, %c0_35], %48 {strides = array<i32>} : memref<16x1xf32, #tpu.memory_space<vmem>>, vector<16x1xf32>,
    } else {
    }
    %c0 = arith.constant 0 : index
    %c0_1 = arith.constant 0 : index
    %c0_2 = arith.constant 0 : index
    %3 = vector.load %arg2[%c0, %c0_1, %c0_2] : memref<1x16x64xbf16, #tpu.memory_space<vmem>>, vector<1x16x64xbf16>
    %4 = vector.shape_cast %3 : vector<1x16x64xbf16> to vector<16x64xbf16>
    %c0_3 = arith.constant 0 : index
    %c0_4 = arith.constant 0 : index
    %c0_5 = arith.constant 0 : index
    %5 = vector.load %arg3[%c0_3, %c0_4, %c0_5] : memref<1x16x1xi32, #tpu.memory_space<vmem>>, vector<1x16x1xi32>
    %6 = vector.shape_cast %5 : vector<1x16x1xi32> to vector<16x1xi32>
    %c0_6 = arith.constant 0 : index
    %c0_7 = arith.constant 0 : index
    %7 = vector.load %arg6[%c0_6, %c0_7] : memref<64x128xbf16, #tpu.memory_space<vmem>>, vector<64x128xbf16>
    %cst = arith.constant dense<0.000000e+00> : vector<16x128xf32>
    %8 = tpu.matmul %4, %7, %cst {dimension_numbers = #tpu.dot_dimension_numbers<[1], [0], [0], [1], [0, 0, 1, 1], [], []>} : vector<16x64xbf16>, vector<64x128xbf16>, vector<16x128xf32> -> vector<16x128xf32>
    %c0_8 = arith.constant 0 : index
    %c0_9 = arith.constant 0 : index
    %9 = vector.load %arg7[%c0_8, %c0_9] : memref<1x128xf32, #tpu.memory_space<vmem>>, vector<1x128xf32>
    %10 = vector.broadcast %9 : vector<1x128xf32> to vector<16x128xf32>
    %11 = arith.addf %8, %10 : vector<16x128xf32>
    %c0_10 = arith.constant 0 : index
    %c0_11 = arith.constant 0 : index
    %12 = vector.load %arg11[%c0_10, %c0_11] : memref<16x1xf32, #tpu.memory_space<vmem>>, vector<16x1xf32>
    %cst_12 = arith.constant dense<0xFF800000> : vector<16xf32>
    %13 = vector.multi_reduction <maximumf>, %11, %cst_12 [1] : vector<16x128xf32> to vector<16xf32>
    %14 = vector.shape_cast %13 : vector<16xf32> to vector<16x1xf32>
    %15 = arith.maximumf %12, %14 : vector<16x1xf32>
    %c0_13 = arith.constant 0 : index
    %c0_14 = arith.constant 0 : index
    %16 = vector.load %arg12[%c0_13, %c0_14] : memref<16x1xf32, #tpu.memory_space<vmem>>, vector<16x1xf32>
    %17 = arith.subf %12, %15 : vector<16x1xf32>
    %18 = math.exp %17 : vector<16x1xf32>
    %19 = arith.mulf %16, %18 : vector<16x1xf32>
    %20 = vector.broadcast %15 : vector<16x1xf32> to vector<16x128xf32>
    %21 = arith.subf %11, %20 : vector<16x128xf32>
    %22 = math.exp %21 : vector<16x128xf32>
    %cst_15 = arith.constant dense<0.000000e+00> : vector<16xf32>
    %23 = vector.multi_reduction <add>, %22, %cst_15 [1] : vector<16x128xf32> to vector<16xf32>
    %24 = vector.shape_cast %23 : vector<16xf32> to vector<16x1xf32>
    %25 = arith.addf %19, %24 : vector<16x1xf32>
    %c0_16 = arith.constant 0 : index
    %c0_17 = arith.constant 0 : index
    %26 = vector.load %arg12[%c0_16, %c0_17] : memref<16x1xf32, #tpu.memory_space<vmem>>, vector<16x1xf32>
    tpu.vector_store %arg12[%c0_16, %c0_17], %25 {strides = array<i32>} : memref<16x1xf32, #tpu.memory_space<vmem>>, vector<16x1xf32>,
    %c0_18 = arith.constant 0 : index
    %c0_19 = arith.constant 0 : index
    %27 = vector.load %arg11[%c0_18, %c0_19] : memref<16x1xf32, #tpu.memory_space<vmem>>, vector<16x1xf32>
    tpu.vector_store %arg11[%c0_18, %c0_19], %15 {strides = array<i32>} : memref<16x1xf32, #tpu.memory_space<vmem>>, vector<16x1xf32>,
    %28 = tpu.iota {dimensions = array<i32: 1>} : vector<16x128xi32>
    %c128_i32 = arith.constant 128 : i32
    %29 = arith.muli %arg1, %c128_i32 : i32
    %30 = vector.broadcast %29 : i32 to vector<16x128xi32>
    %31 = arith.addi %28, %30 : vector<16x128xi32>
    %32 = vector.broadcast %6 : vector<16x1xi32> to vector<16x128xi32>
    %33 = arith.cmpi eq, %31, %32 : vector<16x128xi32>
    %c0_20 = arith.constant 0 : index
    %c0_21 = arith.constant 0 : index
    %34 = vector.load %arg13[%c0_20, %c0_21] : memref<16x1xf32, #tpu.memory_space<vmem>>, vector<16x1xf32>
    %cst_22 = arith.constant 0.000000e+00 : f32
    %35 = vector.broadcast %cst_22 : f32 to vector<16x128xf32>
    %36 = arith.select %33, %11, %35 : vector<16x128xi1>, vector<16x128xf32>
    %cst_23 = arith.constant dense<0.000000e+00> : vector<16xf32>
    %37 = vector.multi_reduction <add>, %36, %cst_23 [1] : vector<16x128xf32> to vector<16xf32>
    %38 = vector.shape_cast %37 : vector<16xf32> to vector<16x1xf32>
    %39 = arith.addf %34, %38 : vector<16x1xf32>
    %c0_24 = arith.constant 0 : index
    %c0_25 = arith.constant 0 : index
    %40 = vector.load %arg13[%c0_24, %c0_25] : memref<16x1xf32, #tpu.memory_space<vmem>>, vector<16x1xf32>
    tpu.vector_store %arg13[%c0_24, %c0_25], %39 {strides = array<i32>} : memref<16x1xf32, #tpu.memory_space<vmem>>, vector<16x1xf32>,
    %c1_i32 = arith.constant 1 : i32
    %41 = arith.cmpi eq, %arg1, %c1_i32 : i32
    %42 = arith.extui %41 : i1 to i32
    %c0_i32_26 = arith.constant 0 : i32
    %43 = arith.cmpi ne, %42, %c0_i32_26 : i32
    scf.if %43 {
      %c0_27 = arith.constant 0 : index
      %c0_28 = arith.constant 0 : index
      %44 = vector.load %arg11[%c0_27, %c0_28] : memref<16x1xf32, #tpu.memory_space<vmem>>, vector<16x1xf32>
      %c0_29 = arith.constant 0 : index
      %c0_30 = arith.constant 0 : index
      %45 = vector.load %arg12[%c0_29, %c0_30] : memref<16x1xf32, #tpu.memory_space<vmem>>, vector<16x1xf32>
      %46 = math.log %45 : vector<16x1xf32>
      %47 = arith.addf %44, %46 : vector<16x1xf32>
      %c0_31 = arith.constant 0 : index
      %c0_32 = arith.constant 0 : index
      %48 = vector.load %arg13[%c0_31, %c0_32] : memref<16x1xf32, #tpu.memory_space<vmem>>, vector<16x1xf32>
      %49 = arith.subf %47, %48 : vector<16x1xf32>
      %c-100_i32 = arith.constant -100 : i32
      %50 = vector.broadcast %c-100_i32 : i32 to vector<16x1xi32>
      %51 = arith.cmpi ne, %6, %50 : vector<16x1xi32>
      %52 = arith.extui %51 : vector<16x1xi1> to vector<16x1xi32>
      %53 = arith.sitofp %52 : vector<16x1xi32> to vector<16x1xf32>
      %54 = arith.mulf %49, %53 : vector<16x1xf32>
      %55 = vector.shape_cast %54 : vector<16x1xf32> to vector<1x16x1xf32>
      %cst_33 = arith.constant dense<0.000000e+00> : vector<1xf32>
      %56 = vector.multi_reduction <add>, %55, %cst_33 [1, 2] : vector<1x16x1xf32> to vector<1xf32>
      %57 = vector.shape_cast %56 : vector<1xf32> to vector<1x1x1xf32>
      %58 = vector.extract %57[0, 0, 0] : f32 from vector<1x1x1xf32>
      %59 = vector.shape_cast %53 : vector<16x1xf32> to vector<1x16x1xf32>
      %cst_34 = arith.constant dense<0.000000e+00> : vector<1xf32>
      %60 = vector.multi_reduction <add>, %59, %cst_34 [1, 2] : vector<1x16x1xf32> to vector<1xf32>
      %61 = vector.shape_cast %60 : vector<1xf32> to vector<1x1x1xf32>
      %62 = vector.extract %61[0, 0, 0] : f32 from vector<1x1x1xf32>
      %c0_35 = arith.constant 0 : index
      %c0_36 = arith.constant 0 : index
      %c0_37 = arith.constant 0 : index
      %63 = vector.load %arg4[%c0_35, %c0_36, %c0_37] : memref<1x16x1xf32, #tpu.memory_space<vmem>>, vector<1x16x1xf32>
      %64 = vector.shape_cast %63 : vector<1x16x1xf32> to vector<16x1xf32>
      %65 = arith.extf %4 : vector<16x64xbf16> to vector<16x64xf32>
      %c0_38 = arith.constant 0 : index
      %c0_39 = arith.constant 0 : index
      %66 = vector.load %arg5[%c0_38, %c0_39] : memref<1x64xf32, #tpu.memory_space<vmem>>, vector<1x64xf32>
      %67 = vector.broadcast %66 : vector<1x64xf32> to vector<16x64xf32>
      %68 = arith.mulf %65, %67 : vector<16x64xf32>
      %cst_40 = arith.constant dense<0.000000e+00> : vector<16xf32>
      %69 = vector.multi_reduction <add>, %68, %cst_40 [1] : vector<16x64xf32> to vector<16xf32>
      %70 = vector.shape_cast %69 : vector<16xf32> to vector<16x1xf32>
      %71 = arith.mulf %64, %70 : vector<16x1xf32>
      %72 = math.absf %71 : vector<16x1xf32>
      %73 = vector.shape_cast %72 : vector<16x1xf32> to vector<1x16x1xf32>
      %cst_41 = arith.constant dense<0.000000e+00> : vector<1xf32>
      %74 = vector.multi_reduction <add>, %73, %cst_41 [1, 2] : vector<1x16x1xf32> to vector<1xf32>
      %75 = vector.shape_cast %74 : vector<1xf32> to vector<1x1x1xf32>
      %76 = vector.extract %75[0, 0, 0] : f32 from vector<1x1x1xf32>
      %77 = vector.broadcast %58 : f32 to vector<1x1x128xf32>
      %c0_42 = arith.constant 0 : index
      %c0_43 = arith.constant 0 : index
      %c0_44 = arith.constant 0 : index
      %78 = vector.load %arg8[%c0_42, %c0_43, %c0_44] : memref<1x1x128xf32, #tpu.memory_space<vmem>>, vector<1x1x128xf32>
      tpu.vector_store %arg8[%c0_42, %c0_43, %c0_44], %77 {strides = array<i32>} : memref<1x1x128xf32, #tpu.memory_space<vmem>>, vector<1x1x128xf32>,
      %79 = vector.broadcast %62 : f32 to vector<1x1x128xf32>
      %c0_45 = arith.constant 0 : index
      %c0_46 = arith.constant 0 : index
      %c0_47 = arith.constant 0 : index
      %80 = vector.load %arg9[%c0_45, %c0_46, %c0_47] : memref<1x1x128xf32, #tpu.memory_space<vmem>>, vector<1x1x128xf32>
      tpu.vector_store %arg9[%c0_45, %c0_46, %c0_47], %79 {strides = array<i32>} : memref<1x1x128xf32, #tpu.memory_space<vmem>>, vector<1x1x128xf32>,
      %81 = vector.broadcast %76 : f32 to vector<1x1x128xf32>
      %c0_48 = arith.constant 0 : index
      %c0_49 = arith.constant 0 : index
      %c0_50 = arith.constant 0 : index
      %82 = vector.load %arg10[%c0_48, %c0_49, %c0_50] : memref<1x1x128xf32, #tpu.memory_space<vmem>>, vector<1x1x128xf32>
      tpu.vector_store %arg10[%c0_48, %c0_49, %c0_50], %81 {strides = array<i32>} : memref<1x1x128xf32, #tpu.memory_space<vmem>>, vector<1x1x128xf32>,
    } else {
    }
    return
  }
  func.func @transform_0(%arg0: i32, %arg1: i32) -> (i32, i32, i32) {
    %c0_i32 = arith.constant 0 : i32
    %c0_i32_0 = arith.constant 0 : i32
    %c0_i32_1 = arith.constant 0 : i32
    return %arg0, %c0_i32, %c0_i32_0 : i32, i32, i32
  }
  func.func @transform_1(%arg0: i32, %arg1: i32) -> (i32, i32, i32) {
    %c0_i32 = arith.constant 0 : i32
    %c0_i32_0 = arith.constant 0 : i32
    %c0_i32_1 = arith.constant 0 : i32
    return %arg0, %c0_i32, %c0_i32_0 : i32, i32, i32
  }
  func.func @transform_2(%arg0: i32, %arg1: i32) -> (i32, i32, i32) {
    %c0_i32 = arith.constant 0 : i32
    %c0_i32_0 = arith.constant 0 : i32
    %c0_i32_1 = arith.constant 0 : i32
    return %arg0, %c0_i32, %c0_i32_0 : i32, i32, i32
  }
  func.func @transform_3(%arg0: i32, %arg1: i32) -> (i32, i32) {
    %c0_i32 = arith.constant 0 : i32
    %c0_i32_0 = arith.constant 0 : i32
    %c0_i32_1 = arith.constant 0 : i32
    return %c0_i32, %c0_i32_0 : i32, i32
  }
  func.func @transform_4(%arg0: i32, %arg1: i32) -> (i32, i32) {
    %c0_i32 = arith.constant 0 : i32
    %c0_i32_0 = arith.constant 0 : i32
    return %c0_i32, %arg1 : i32, i32
  }
  func.func @transform_5(%arg0: i32, %arg1: i32) -> (i32, i32) {
    %c0_i32 = arith.constant 0 : i32
    %c0_i32_0 = arith.constant 0 : i32
    return %c0_i32, %arg1 : i32, i32
  }
  func.func @transform_6(%arg0: i32, %arg1: i32) -> (i32, i32, i32) {
    %c0_i32 = arith.constant 0 : i32
    %c0_i32_0 = arith.constant 0 : i32
    %c0_i32_1 = arith.constant 0 : i32
    return %arg0, %c0_i32, %c0_i32_0 : i32, i32, i32
  }
  func.func @transform_7(%arg0: i32, %arg1: i32) -> (i32, i32, i32) {
    %c0_i32 = arith.constant 0 : i32
    %c0_i32_0 = arith.constant 0 : i32
    %c0_i32_1 = arith.constant 0 : i32
    return %arg0, %c0_i32, %c0_i32_0 : i32, i32, i32
  }
  func.func @transform_8(%arg0: i32, %arg1: i32) -> (i32, i32, i32) {
    %c0_i32 = arith.constant 0 : i32
    %c0_i32_0 = arith.constant 0 : i32
    %c0_i32_1 = arith.constant 0 : i32
    return %arg0, %c0_i32, %c0_i32_0 : i32, i32, i32
  }
}

</mosaic_0001>

<llo_original>
// kernel: bert_debias_losses.1
$region0: #{bert_debias_losses.1}
  #allocation0 [shape = 'u32[]', space=smem, size = 0x4, offset = 0x4, fixed_abs, tag = 'smem constant byte address 0x4 - core index']
  #allocation1 [shape = 'u32[144,128]{1,0:T(1,128)}', space=vmem, size = 0x12000, scoped, tag = 'internal scratch']
  #allocation2 [shape = 'f32[16,1]{1,0:T(8,128)}', space=vmem, size = 0x2000, scoped, tag = 'scratch operand']
  #allocation3 [shape = 'f32[16,1]{1,0:T(8,128)}', space=vmem, size = 0x2000, scoped, tag = 'scratch operand']
  #allocation4 [shape = 'f32[16,1]{1,0:T(8,128)}', space=vmem, size = 0x2000, scoped, tag = 'scratch operand']
  %s0 = inlined_call_operand.vmem [shape: bf16[2,16,64], index: 0, kind: input, shape index: {}]
  %s1 = inlined_call_operand.vmem [shape: s32[2,16,1], index: 1, kind: input, shape index: {}]
  %s2 = inlined_call_operand.vmem [shape: f32[2,16,1], index: 2, kind: input, shape index: {}]
  %s3 = inlined_call_operand.vmem [shape: f32[1,64], index: 3, kind: input, shape index: {}]
  %s4 = inlined_call_operand.vmem [shape: bf16[64,256], index: 4, kind: input, shape index: {}]
  %s5 = inlined_call_operand.vmem [shape: f32[1,256], index: 5, kind: input, shape index: {}]
  %s6 = inlined_call_operand.vmem [shape: f32[2,1,128], index: 6, kind: output, shape index: {0}]
  %s7 = inlined_call_operand.vmem [shape: f32[2,1,128], index: 7, kind: output, shape index: {1}]
  %s8 = inlined_call_operand.vmem [shape: f32[2,1,128], index: 8, kind: output, shape index: {2}]
  %9 = xla_tuple %s6, %s7, %s8
  %s10 = sld [smem:[#allocation0]]
  $region122: #{bert_debias_losses.1} parent=0
    _
  %s12 = ssub.s32 1, %s10
  %s13 = scalar_select 0, %s12, %s10
  $region1: #{bert_debias_losses.1} parent=0
    #allocation5 [shape = 'u8[32768]{0}', space=vmem, size = 0x8000, scoped, tag = 'input window, operand 4']
    loop: start=0, step=1, limit=6
    $region2: #{bert_debias_losses.1} parent=1 // loop_pre_header
      _
    $region3: #{bert_debias_losses.1} parent=1 // loop_header
      %s15 = sphi 0, %s19
      %p16 = scmp.ge.s32.totalorder %s15, 6
      %s22 = sphi 0, %s34
      %s23 = sphi 0, %s30
      %s24 = sphi 0, %s22
      %s25 = sphi 0, %s23
      %s26 = sphi 0, %s24
      %s27 = sphi 0, %s25
      %s37 = sphi 0, %s39
      %s40 = sphi 0, %s37
      %s41 = sphi 0, %s40
      %s57 = sphi 0, %s41
      %s63 = sphi 0, %s65
      %s66 = sphi 0, %s63
      %s67 = sphi 0, %s66
      %s83 = sphi 0, %s67
      %s89 = sphi 0, %s91
      %s92 = sphi 0, %s89
      %s93 = sphi 0, %s92
      %s109 = sphi 0, %s93
      %s113 = sphi 0, %s113
      %s115 = sphi 0, %s113
      %s116 = sphi 0, %s115
      %s130 = sphi 0, %s116
      %s136 = sphi 0, %s138
      %s139 = sphi 0, %s136
      %s140 = sphi 0, %s139
      %s156 = sphi 0, %s140
      %s162 = sphi 0, %s164
      %s165 = sphi 0, %s162
      %s166 = sphi 0, %s165
      %s182 = sphi 0, %s166
      %s188 = sphi 0, %s190
      %s191 = sphi 0, %s188
      %s192 = sphi 0, %s191
      %s208 = sphi 0, %s192
      %s214 = sphi 0, %s216
      %s217 = sphi 0, %s214
      %s218 = sphi 0, %s217
      %s234 = sphi 0, %s218
      %s240 = sphi 0, %s242
      %s243 = sphi 0, %s240
      %s244 = sphi 0, %s243
      %s260 = sphi 0, %s244
    $region4: #{bert_debias_losses.1} parent=1 // loop_header_branch
      %18 = sbr.rel (%p16) target = $region8
    $region5: #{bert_debias_losses.1} parent=1 // loop_body
      %s20 = ssub.s32 %s15, 1
      %s21 = ssub.s32 %s15, 2
      %s28 = sadd.s32 1, %s23
      %p29 = scmp.ge.s32.totalorder %s28, 2
      %s30 = scalar_select %p29, 0, %s28
      %s31 = sadd.s32 1, %s22
      %s32 = scalar_select %p29, %s31, %s22
      %p33 = scmp.ge.s32.totalorder %s32, 2
      %s34 = scalar_select %p33, 0, %s32
      %s35 = ssub.s32 %s22, %s34
      %p36 = scmp.eq.s32.totalorder %s35, 0
      %s38 = sadd.s32 %s37, 1
      %s39 = scalar_select %p36, %s37, %s38
      %p42 = pneg %p36
      %p43 = scmp.eq.s32.totalorder %s15, 3
      %p44 = por %p42, %p43
      %p45 = scmp.ne.s32.totalorder %s37, %s40
      %p46 = scmp.eq.s32.totalorder %s15, 0
      %p47 = por %p45, %p46
      %p48 = scmp.ne.s32.totalorder %s37, %s40
      %p49 = scmp.eq.s32.totalorder %s20, 3
      %p50 = por %p48, %p49
      %p51 = scmp.ne.s32.totalorder %s40, %s41
      %p52 = scmp.eq.s32.totalorder %s20, 0
      %p53 = por %p51, %p52
      %p54 = scmp.ne.s32.totalorder %s40, %s41
      %p55 = scmp.eq.s32.totalorder %s21, 3
      %p56 = por %p54, %p55
      %p58 = scmp.ne.s32.totalorder %s41, %s57
      %p59 = scmp.eq.s32.totalorder %s21, 0
      %p60 = por %p58, %p59
      %s61 = ssub.s32 %s22, %s34
      %p62 = scmp.eq.s32.totalorder %s61, 0
      %s64 = sadd.s32 %s63, 1
      %s65 = scalar_select %p62, %s63, %s64
      %p68 = pneg %p62
      %p69 = scmp.eq.s32.totalorder %s15, 3
      %p70 = por %p68, %p69
      %p71 = scmp.ne.s32.totalorder %s63, %s66
      %p72 = scmp.eq.s32.totalorder %s15, 0
      %p73 = por %p71, %p72
      %p74 = scmp.ne.s32.totalorder %s63, %s66
      %p75 = scmp.eq.s32.totalorder %s20, 3
      %p76 = por %p74, %p75
      %p77 = scmp.ne.s32.totalorder %s66, %s67
      %p78 = scmp.eq.s32.totalorder %s20, 0
      %p79 = por %p77, %p78
      %p80 = scmp.ne.s32.totalorder %s66, %s67
      %p81 = scmp.eq.s32.totalorder %s21, 3
      %p82 = por %p80, %p81
      %p84 = scmp.ne.s32.totalorder %s67, %s83
      %p85 = scmp.eq.s32.totalorder %s21, 0
      %p86 = por %p84, %p85
      %s87 = ssub.s32 %s22, %s34
      %p88 = scmp.eq.s32.totalorder %s87, 0
      %s90 = sadd.s32 %s89, 1
      %s91 = scalar_select %p88, %s89, %s90
      %p94 = pneg %p88
      %p95 = scmp.eq.s32.totalorder %s15, 3
      %p96 = por %p94, %p95
      %p97 = scmp.ne.s32.totalorder %s89, %s92
      %p98 = scmp.eq.s32.totalorder %s15, 0
      %p99 = por %p97, %p98
      %p100 = scmp.ne.s32.totalorder %s89, %s92
      %p101 = scmp.eq.s32.totalorder %s20, 3
      %p102 = por %p100, %p101
      %p103 = scmp.ne.s32.totalorder %s92, %s93
      %p104 = scmp.eq.s32.totalorder %s20, 0
      %p105 = por %p103, %p104
      %p106 = scmp.ne.s32.totalorder %s92, %s93
      %p107 = scmp.eq.s32.totalorder %s21, 3
      %p108 = por %p106, %p107
      %p110 = scmp.ne.s32.totalorder %s93, %s109
      %p111 = scmp.eq.s32.totalorder %s21, 0
      %p112 = por %p110, %p111
      %s114 = sadd.s32 %s113, 1
      %p117 = scmp.eq.s32.totalorder %s15, 3
      %p118 = scmp.ne.s32.totalorder %s113, %s115
      %p119 = scmp.eq.s32.totalorder %s15, 0
      %p120 = por %p118, %p119
      %p121 = scmp.ne.s32.totalorder %s113, %s115
      %p122 = scmp.eq.s32.totalorder %s20, 3
      %p123 = por %p121, %p122
      %p124 = scmp.ne.s32.totalorder %s115, %s116
      %p125 = scmp.eq.s32.totalorder %s20, 0
      %p126 = por %p124, %p125
      %p127 = scmp.ne.s32.totalorder %s115, %s116
      %p128 = scmp.eq.s32.totalorder %s21, 3
      %p129 = por %p127, %p128
      %p131 = scmp.ne.s32.totalorder %s116, %s130
      %p132 = scmp.eq.s32.totalorder %s21, 0
      %p133 = por %p131, %p132
      %s134 = ssub.s32 %s23, %s30
      %p135 = scmp.eq.s32.totalorder %s134, 0
      %s137 = sadd.s32 %s136, 1
      %s138 = scalar_select %p135, %s136, %s137
      %p141 = pneg %p135
      %p142 = scmp.eq.s32.totalorder %s15, 3
      %p143 = por %p141, %p142
      %p144 = scmp.ne.s32.totalorder %s136, %s139
      %p145 = scmp.eq.s32.totalorder %s15, 0
      %p146 = por %p144, %p145
      %p147 = scmp.ne.s32.totalorder %s136, %s139
      %p148 = scmp.eq.s32.totalorder %s20, 3
      %p149 = por %p147, %p148
      %p150 = scmp.ne.s32.totalorder %s139, %s140
      %p151 = scmp.eq.s32.totalorder %s20, 0
      %p152 = por %p150, %p151
      %p153 = scmp.ne.s32.totalorder %s139, %s140
      %p154 = scmp.eq.s32.totalorder %s21, 3
      %p155 = por %p153, %p154
      %p157 = scmp.ne.s32.totalorder %s140, %s156
      %p158 = scmp.eq.s32.totalorder %s21, 0
      %p159 = por %p157, %p158
      %s160 = ssub.s32 %s23, %s30
      %p161 = scmp.eq.s32.totalorder %s160, 0
      %s163 = sadd.s32 %s162, 1
      %s164 = scalar_select %p161, %s162, %s163
      %p167 = pneg %p161
      %p168 = scmp.eq.s32.totalorder %s15, 3
      %p169 = por %p167, %p168
      %p170 = scmp.ne.s32.totalorder %s162, %s165
      %p171 = scmp.eq.s32.totalorder %s15, 0
      %p172 = por %p170, %p171
      %p173 = scmp.ne.s32.totalorder %s162, %s165
      %p174 = scmp.eq.s32.totalorder %s20, 3
      %p175 = por %p173, %p174
      %p176 = scmp.ne.s32.totalorder %s165, %s166
      %p177 = scmp.eq.s32.totalorder %s20, 0
      %p178 = por %p176, %p177
      %p179 = scmp.ne.s32.totalorder %s165, %s166
      %p180 = scmp.eq.s32.totalorder %s21, 3
      %p181 = por %p179, %p180
      %p183 = scmp.ne.s32.totalorder %s166, %s182
      %p184 = scmp.eq.s32.totalorder %s21, 0
      %p185 = por %p183, %p184
      %s186 = ssub.s32 %s22, %s34
      %p187 = scmp.eq.s32.totalorder %s186, 0
      %s189 = sadd.s32 %s188, 1
      %s190 = scalar_select %p187, %s188, %s189
      %p193 = pneg %p187
      %p194 = scmp.eq.s32.totalorder %s15, 3
      %p195 = por %p193, %p194
      %p196 = scmp.ne.s32.totalorder %s188, %s191
      %p197 = scmp.eq.s32.totalorder %s15, 0
      %p198 = por %p196, %p197
      %p199 = scmp.ne.s32.totalorder %s188, %s191
      %p200 = scmp.eq.s32.totalorder %s20, 3
      %p201 = por %p199, %p200
      %p202 = scmp.ne.s32.totalorder %s191, %s192
      %p203 = scmp.eq.s32.totalorder %s20, 0
      %p204 = por %p202, %p203
      %p205 = scmp.ne.s32.totalorder %s191, %s192
      %p206 = scmp.eq.s32.totalorder %s21, 3
      %p207 = por %p205, %p206
      %p209 = scmp.ne.s32.totalorder %s192, %s208
      %p210 = scmp.eq.s32.totalorder %s21, 0
      %p211 = por %p209, %p210
      %s212 = ssub.s32 %s22, %s34
      %p213 = scmp.eq.s32.totalorder %s212, 0
      %s215 = sadd.s32 %s214, 1
      %s216 = scalar_select %p213, %s214, %s215
      %p219 = pneg %p213
      %p220 = scmp.eq.s32.totalorder %s15, 3
      %p221 = por %p219, %p220
      %p222 = scmp.ne.s32.totalorder %s214, %s217
      %p223 = scmp.eq.s32.totalorder %s15, 0
      %p224 = por %p222, %p223
      %p225 = scmp.ne.s32.totalorder %s214, %s217
      %p226 = scmp.eq.s32.totalorder %s20, 3
      %p227 = por %p225, %p226
      %p228 = scmp.ne.s32.totalorder %s217, %s218
      %p229 = scmp.eq.s32.totalorder %s20, 0
      %p230 = por %p228, %p229
      %p231 = scmp.ne.s32.totalorder %s217, %s218
      %p232 = scmp.eq.s32.totalorder %s21, 3
      %p233 = por %p231, %p232
      %p235 = scmp.ne.s32.totalorder %s218, %s234
      %p236 = scmp.eq.s32.totalorder %s21, 0
      %p237 = por %p235, %p236
      %s238 = ssub.s32 %s22, %s34
      %p239 = scmp.eq.s32.totalorder %s238, 0
      %s241 = sadd.s32 %s240, 1
      %s242 = scalar_select %p239, %s240, %s241
      %p245 = pneg %p239
      %p246 = scmp.eq.s32.totalorder %s15, 3
      %p247 = por %p245, %p246
      %p248 = scmp.ne.s32.totalorder %s240, %s243
      %p249 = scmp.eq.s32.totalorder %s15, 0
      %p250 = por %p248, %p249
      %p251 = scmp.ne.s32.totalorder %s240, %s243
      %p252 = scmp.eq.s32.totalorder %s20, 3
      %p253 = por %p251, %p252
      %p254 = scmp.ne.s32.totalorder %s243, %s244
      %p255 = scmp.eq.s32.totalorder %s20, 0
      %p256 = por %p254, %p255
      %p257 = scmp.ne.s32.totalorder %s243, %s244
      %p258 = scmp.eq.s32.totalorder %s21, 3
      %p259 = por %p257, %p258
      %p261 = scmp.ne.s32.totalorder %s244, %s260
      %p262 = scmp.eq.s32.totalorder %s21, 0
      %p263 = por %p261, %p262
      %p264 = scmp.le.s32.totalorder 1, %s15
      %p265 = scmp.lt.s32.totalorder %s15, 5
      %p266 = pnand %p264, %p265
      %p267 = pneg %p266
      // Predicated region
      $region9: #{bert_debias_losses.1} parent=5 // pred_check
        _
      $region10: #{bert_debias_losses.1} parent=5 // pred_check_branch
        %269 = sbr.rel (%p266) target = $region12
      $region11: #{bert_debias_losses.1} parent=5 // pred_region
        %s270 = ssub.s32 %s15, 1
        // Predicated region
        $region13: #{bert_debias_losses.1} parent=11 // pred_check
          %p271 = pneg %p126
        $region14: #{bert_debias_losses.1} parent=11 // pred_check_branch
          %273 = sbr.rel (%p271) target = $region16
        $region15: #{bert_debias_losses.1} parent=11 // pred_region
          _
        $region16: #{bert_debias_losses.1} parent=11 // pred_fallthru
          _
      $region12: #{bert_debias_losses.1} parent=5 // pred_fallthru
        _
      %p274 = scmp.lt.s32.totalorder %s15, 4
      // Predicated region
      $region17: #{bert_debias_losses.1} parent=5 // pred_check
        %p275 = pneg %p274
      $region18: #{bert_debias_losses.1} parent=5 // pred_check_branch
        %277 = sbr.rel (%p275) target = $region20
      $region19: #{bert_debias_losses.1} parent=5 // pred_region
        // Predicated region
        $region21: #{bert_debias_losses.1} parent=19 // pred_check
          %p278 = pneg %p47
        $region22: #{bert_debias_losses.1} parent=19 // pred_check_branch
          %280 = sbr.rel (%p278) target = $region24
        $region23: #{bert_debias_losses.1} parent=19 // pred_region
          %p281 = scmp.lt.s32.totalorder %s22, 1
          %s282 = scalar_select %p281, %s22, 1
          %s283 = smul.addr %s282, 2
          %s284 = smul.addr %s283, 4
          %s285 = scalar_lea.vmem %s0, %s284
        $region24: #{bert_debias_losses.1} parent=19 // pred_fallthru
          _
        // Predicated region
        $region25: #{bert_debias_losses.1} parent=19 // pred_check
          %p286 = pneg %p73
        $region26: #{bert_debias_losses.1} parent=19 // pred_check_branch
          %288 = sbr.rel (%p286) target = $region28
        $region27: #{bert_debias_losses.1} parent=19 // pred_region
          %p289 = scmp.lt.s32.totalorder %s22, 1
          %s290 = scalar_select %p289, %s22, 1
          %s291 = smul.addr %s290, 2
          %s292 = smul.addr %s291, 8
          %s293 = scalar_lea.vmem %s1, %s292
        $region28: #{bert_debias_losses.1} parent=19 // pred_fallthru
          _
        // Predicated region
        $region29: #{bert_debias_losses.1} parent=19 // pred_check
          %p294 = pneg %p99
        $region30: #{bert_debias_losses.1} parent=19 // pred_check_branch
          %296 = sbr.rel (%p294) target = $region32
        $region31: #{bert_debias_losses.1} parent=19 // pred_region
          %p297 = scmp.lt.s32.totalorder %s22, 1
          %s298 = scalar_select %p297, %s22, 1
          %s299 = smul.addr %s298, 2
          %s300 = smul.addr %s299, 8
          %s301 = scalar_lea.vmem %s2, %s300
        $region32: #{bert_debias_losses.1} parent=19 // pred_fallthru
          _
        // Predicated region
        $region33: #{bert_debias_losses.1} parent=19 // pred_check
          %p302 = pneg %p146
        $region34: #{bert_debias_losses.1} parent=19 // pred_check_branch
          %304 = sbr.rel (%p302) target = $region36
        $region35: #{bert_debias_losses.1} parent=19 // pred_region
          %s305 = sand.u32 %s136, 1
          %s306 = sand.u32 %s136, 1
          %s307 = smul.addr %s306, 32
          %s308 = scalar_lea.vmem [#allocation5], %s307
          %s309 = smul.addr %s23, 4
          %s310 = scalar_lea.vmem %s4, %s309
          // Predicated region
          $region37: #{bert_debias_losses.1} parent=35 // pred_check
            _
          $region38: #{bert_debias_losses.1} parent=35 // pred_check_branch
            %312 = sbr.rel (0) target = $region40
          $region39: #{bert_debias_losses.1} parent=35 // pred_region
            // Predicated region
            $region41: #{bert_debias_losses.1} parent=39 // pred_check
              _
            $region42: #{bert_debias_losses.1} parent=39 // pred_check_branch
              %314 = sbr.rel target = $region44
            $region43: #{bert_debias_losses.1} parent=39 // pred_region
              // Predicated region
              $region56: #{bert_debias_losses.1} parent=43 // pred_check
                _
              $region57: #{bert_debias_losses.1} parent=43 // pred_check_branch
                %343 = sbr.rel (0) target = $region59
              $region58: #{bert_debias_losses.1} parent=43 // pred_region
                loop: start=0, step=1, limit=1
                $region60: #{bert_debias_losses.1} parent=58 // loop_pre_header
                  _
                $region61: #{bert_debias_losses.1} parent=58 // loop_header
                  %s345 = sphi 0, %s349
                  %p346 = scmp.ge.s32.totalorder %s345, 1
                  %s350 = sphi %s310, %s310
                  %s351 = sphi %s308, %s308
                $region62: #{bert_debias_losses.1} parent=58 // loop_header_branch
                  %348 = sbr.rel (%p346) target = $region66
                $region63: #{bert_debias_losses.1} parent=58 // loop_body
                  _
                $region64: #{bert_debias_losses.1} parent=58 // loop_footer
                  %s349 = sadd.s32 1, %s345
                $region65: #{bert_debias_losses.1} parent=58 // loop_footer_branch
                  %344 = sbr.rel target = $region61
                $region66: #{bert_debias_losses.1} parent=58 // loop_exit
                  _
                loop: start=0, step=1, limit=1
                $region67: #{bert_debias_losses.1} parent=58 // loop_pre_header
                  _
                $region68: #{bert_debias_losses.1} parent=58 // loop_header
                  %s354 = sphi 0, %s358
                  %p355 = scmp.ge.s32.totalorder %s354, 1
                  %s359 = sphi %s310, %s310
                  %s360 = sphi %s308, %s308
                $region69: #{bert_debias_losses.1} parent=58 // loop_header_branch
                  %357 = sbr.rel (%p355) target = $region73
                $region70: #{bert_debias_losses.1} parent=58 // loop_body
                  %v361 = vld [vmem:[%s359] sm:$0xf]
                  %362 = vst [vmem:[%s360] sm:$0xf] %v361
                  %v363 = vld [vmem:[%s359 + $0x8] sm:$0xf]
                  %364 = vst [vmem:[%s360 + $0x4] sm:$0xf] %v363
                  %v365 = vld [vmem:[%s359 + $0x10] sm:$0xf]
                  %366 = vst [vmem:[%s360 + $0x8] sm:$0xf] %v365
                  %v367 = vld [vmem:[%s359 + $0x18] sm:$0xf]
                  %368 = vst [vmem:[%s360 + $0xc] sm:$0xf] %v367
                  %v369 = vld [vmem:[%s359 + $0x20] sm:$0xf]
                  %370 = vst [vmem:[%s360 + $0x10] sm:$0xf] %v369
                  %v371 = vld [vmem:[%s359 + $0x28] sm:$0xf]
                  %372 = vst [vmem:[%s360 + $0x14] sm:$0xf] %v371
                  %v373 = vld [vmem:[%s359 + $0x30] sm:$0xf]
                  %374 = vst [vmem:[%s360 + $0x18] sm:$0xf] %v373
                  %v375 = vld [vmem:[%s359 + $0x38] sm:$0xf]
                  %376 = vst [vmem:[%s360 + $0x1c] sm:$0xf] %v375
                $region71: #{bert_debias_losses.1} parent=58 // loop_footer
                  %s358 = sadd.s32 1, %s354
                $region72: #{bert_debias_losses.1} parent=58 // loop_footer_branch
                  %353 = sbr.rel target = $region68
                $region73: #{bert_debias_losses.1} parent=58 // loop_exit
                  _
              $region59: #{bert_debias_losses.1} parent=43 // pred_fallthru
                _
            $region44: #{bert_debias_losses.1} parent=39 // pred_fallthru
              _
            // Predicated region
            $region45: #{bert_debias_losses.1} parent=39 // pred_check
              _
            $region46: #{bert_debias_losses.1} parent=39 // pred_check_branch
              %316 = sbr.rel (0) target = $region48
            $region47: #{bert_debias_losses.1} parent=39 // pred_region
              loop: start=0, step=1, limit=1
              $region49: #{bert_debias_losses.1} parent=47 // loop_pre_header
                _
              $region50: #{bert_debias_losses.1} parent=47 // loop_header
                %s319 = sphi 0, %s323
                %p320 = scmp.ge.s32.totalorder %s319, 1
                %s324 = sphi %s310, %s310
                %s325 = sphi %s308, %s308
              $region51: #{bert_debias_losses.1} parent=47 // loop_header_branch
                %322 = sbr.rel (%p320) target = $region55
              $region52: #{bert_debias_losses.1} parent=47 // loop_body
                %v326 = vld [vmem:[%s324] sm:$0xf]
                %327 = vst [vmem:[%s325] sm:$0xf] %v326
                %v328 = vld [vmem:[%s324 + $0x8] sm:$0xf]
                %329 = vst [vmem:[%s325 + $0x4] sm:$0xf] %v328
                %v330 = vld [vmem:[%s324 + $0x10] sm:$0xf]
                %331 = vst [vmem:[%s325 + $0x8] sm:$0xf] %v330
                %v332 = vld [vmem:[%s324 + $0x18] sm:$0xf]
                %333 = vst [vmem:[%s325 + $0xc] sm:$0xf] %v332
                %v334 = vld [vmem:[%s324 + $0x20] sm:$0xf]
                %335 = vst [vmem:[%s325 + $0x10] sm:$0xf] %v334
                %v336 = vld [vmem:[%s324 + $0x28] sm:$0xf]
                %337 = vst [vmem:[%s325 + $0x14] sm:$0xf] %v336
                %v338 = vld [vmem:[%s324 + $0x30] sm:$0xf]
                %339 = vst [vmem:[%s325 + $0x18] sm:$0xf] %v338
                %v340 = vld [vmem:[%s324 + $0x38] sm:$0xf]
                %341 = vst [vmem:[%s325 + $0x1c] sm:$0xf] %v340
              $region53: #{bert_debias_losses.1} parent=47 // loop_footer
                %s323 = sadd.s32 1, %s319
              $region54: #{bert_debias_losses.1} parent=47 // loop_footer_branch
                %318 = sbr.rel target = $region50
              $region55: #{bert_debias_losses.1} parent=47 // loop_exit
                _
            $region48: #{bert_debias_losses.1} parent=39 // pred_fallthru
              _
          $region40: #{bert_debias_losses.1} parent=35 // pred_fallthru
            _
          %377 = vnop
        $region36: #{bert_debias_losses.1} parent=19 // pred_fallthru
          _
        // Predicated region
        $region74: #{bert_debias_losses.1} parent=19 // pred_check
          %p378 = pneg %p172
        $region75: #{bert_debias_losses.1} parent=19 // pred_check_branch
          %380 = sbr.rel (%p378) target = $region77
        $region76: #{bert_debias_losses.1} parent=19 // pred_region
          %p381 = scmp.lt.s32.totalorder %s23, 1
          %s382 = scalar_select %p381, %s23, 1
          %s383 = scalar_lea.vmem %s5, %s382
        $region77: #{bert_debias_losses.1} parent=19 // pred_fallthru
          _
      $region20: #{bert_debias_losses.1} parent=5 // pred_fallthru
        _
      %p384 = scmp.le.s32.totalorder 1, %s15
      %p385 = scmp.lt.s32.totalorder %s15, 5
      %p386 = pnand %p384, %p385
      %p387 = pneg %p386
      // Predicated region
      $region78: #{bert_debias_losses.1} parent=5 // pred_check
        _
      $region79: #{bert_debias_losses.1} parent=5 // pred_check_branch
        %389 = sbr.rel (%p386) target = $region81
      $region80: #{bert_debias_losses.1} parent=5 // pred_region
        %s390 = ssub.s32 %s15, 1
        %s391 = sand.u32 %s139, 1
        %s392 = sand.u32 %s139, 1
        %s393 = smul.addr %s392, 32
        %s394 = scalar_lea.vmem [#allocation5], %s393
        // Predicated region
        $region82: #{bert_debias_losses.1} parent=80 // pred_check
          %p395 = pneg %p152
        $region83: #{bert_debias_losses.1} parent=80 // pred_check_branch
          %397 = sbr.rel (%p395) target = $region85
        $region84: #{bert_debias_losses.1} parent=80 // pred_region
          _
        $region85: #{bert_debias_losses.1} parent=80 // pred_fallthru
          _
        %p398 = scmp.lt.s32.totalorder %s24, 1
        %s399 = scalar_select %p398, %s24, 1
        %s400 = smul.addr %s399, 2
        %s401 = smul.addr %s400, 4
        %s402 = scalar_lea.vmem %s0, %s401
        %p403 = pneg %p53
        %p404 = pneg %p50
        %p405 = scmp.lt.s32.totalorder %s24, 1
        %s406 = scalar_select %p405, %s24, 1
        %s407 = smul.addr %s406, 2
        %s408 = smul.addr %s407, 8
        %s409 = scalar_lea.vmem %s1, %s408
        %p410 = pneg %p79
        %p411 = pneg %p76
        %p412 = scmp.lt.s32.totalorder %s24, 1
        %s413 = scalar_select %p412, %s24, 1
        %s414 = smul.addr %s413, 2
        %s415 = smul.addr %s414, 8
        %s416 = scalar_lea.vmem %s2, %s415
        %p417 = pneg %p105
        %p418 = pneg %p102
        %p419 = pneg %p126
        %p420 = pneg %p123
        %s421 = sand.u32 %s139, 1
        %s422 = sand.u32 %s139, 1
        %s423 = smul.addr %s422, 32
        %s424 = scalar_lea.vmem [#allocation5], %s423
        %p425 = pneg %p152
        %p426 = pneg %p149
        %p427 = scmp.lt.s32.totalorder %s25, 1
        %s428 = scalar_select %p427, %s25, 1
        %s429 = scalar_lea.vmem %s5, %s428
        %p430 = pneg %p178
        %p431 = pneg %p175
        %p432 = pneg %p204
        %p433 = pneg %p201
        %p434 = scmp.lt.s32.totalorder %s24, 1
        %s435 = scalar_select %p434, %s24, 1
        %s436 = scalar_lea.vmem %s6, %s435
        %p437 = pneg %p230
        %p438 = pneg %p227
        %p439 = scmp.lt.s32.totalorder %s24, 1
        %s440 = scalar_select %p439, %s24, 1
        %s441 = scalar_lea.vmem %s7, %s440
        %p442 = pneg %p256
        %p443 = pneg %p253
        %p444 = scmp.lt.s32.totalorder %s24, 1
        %s445 = scalar_select %p444, %s24, 1
        %s446 = scalar_lea.vmem %s8, %s445
        %p447 = scmp.lt.s32.totalorder %s24, 1
        %s448 = scalar_select %p447, %s24, 1
        %s449 = smul.addr %s448, 2
        %s450 = smul.addr %s449, 4
        %s451 = scalar_lea.vmem %s0, %s450
        %p452 = scmp.lt.s32.totalorder %s24, 1
        %s453 = scalar_select %p452, %s24, 1
        %s454 = smul.addr %s453, 2
        %s455 = smul.addr %s454, 8
        %s456 = scalar_lea.vmem %s1, %s455
        %p457 = scmp.lt.s32.totalorder %s24, 1
        %s458 = scalar_select %p457, %s24, 1
        %s459 = smul.addr %s458, 2
        %s460 = smul.addr %s459, 8
        %s461 = scalar_lea.vmem %s2, %s460
        %p462 = scmp.lt.s32.totalorder %s25, 1
        %s463 = scalar_select %p462, %s25, 1
        %s464 = scalar_lea.vmem %s5, %s463
        %p465 = scmp.lt.s32.totalorder %s24, 1
        %s466 = scalar_select %p465, %s24, 1
        %s467 = scalar_lea.vmem %s6, %s466
        %p468 = scmp.lt.s32.totalorder %s24, 1
        %s469 = scalar_select %p468, %s24, 1
        %s470 = scalar_lea.vmem %s7, %s469
        %p471 = scmp.lt.s32.totalorder %s24, 1
        %s472 = scalar_select %p471, %s24, 1
        %s473 = scalar_lea.vmem %s8, %s472
        %p475 = scmp.eq.s32.totalorder %s25, 0
        // Predicated region
        $region86: #{bert_debias_losses.1} parent=80 // pred_check
          %p476 = pneg %p475
        $region87: #{bert_debias_losses.1} parent=80 // pred_check_branch
          %478 = sbr.rel (%p476) target = $region89
        $region88: #{bert_debias_losses.1} parent=80 // pred_region
          %vm479 = vcmask 7168
          %480 = vst.msk [vmem:[#allocation2] sm:$0xff] %vm479, -inf
          %481 = vst.msk [vmem:[#allocation2 + $0x8] sm:$0xff] %vm479, -inf
          %482 = vst.msk [vmem:[#allocation3] sm:$0xff] %vm479, 0.0
          %483 = vst.msk [vmem:[#allocation3 + $0x8] sm:$0xff] %vm479, 0.0
          %484 = vst.msk [vmem:[#allocation4] sm:$0xff] %vm479, 0.0
          %485 = vst.msk [vmem:[#allocation4 + $0x8] sm:$0xff] %vm479, 0.0
        $region89: #{bert_debias_losses.1} parent=80 // pred_fallthru
          _
        %v486 = vld [vmem:[%s451] sm:$0xf]
        %v487 = vld [vmem:[%s451 + $0x4] sm:$0xf]
        %v488 = vld [vmem:[%s456] sm:$0xff]
        %v489 = vld [vmem:[%s456 + $0x8] sm:$0xff]
        %v490 = vld [vmem:[%s394] sm:$0xf]
        %v491 = vld [vmem:[%s394 + $0x4] sm:$0xf]
        %v492 = vld [vmem:[%s394 + $0x8] sm:$0xf]
        %v493 = vld [vmem:[%s394 + $0xc] sm:$0xf]
        %v494 = vld [vmem:[%s394 + $0x10] sm:$0xf]
        %v495 = vld [vmem:[%s394 + $0x14] sm:$0xf]
        %v496 = vld [vmem:[%s394 + $0x18] sm:$0xf]
        %v497 = vld [vmem:[%s394 + $0x1c] sm:$0xf]
        %v498 = vld [vmem:[%s464] sm:$0x1]
        %v500 = vlaneseq
        %v501 = vshrl.u32 %v500, 7
        %v502 = vsub.s32 0, %v501
        %v503 = vrot.slane %v498, %v502
        %v507 = vunpack.c.l.b16 %v486
        %v508 = vunpack.c.l.b16 %v487
        %v509 = vpack.c.b16 %v508, %v507
        %v518 = vunpack.c.l.b16 %v490
        %v519 = vunpack.c.l.b16 %v491
        %v520 = vunpack.c.l.b16 %v492
        %v521 = vunpack.c.l.b16 %v493
        %v522 = vunpack.c.l.b16 %v494
        %v523 = vunpack.c.l.b16 %v495
        %v524 = vunpack.c.l.b16 %v496
        %v525 = vunpack.c.l.b16 %v497
        %v526 = vpack.c.b16 %v519, %v518
        %v527 = vpack.c.b16 %v521, %v520
        %v528 = vpack.c.b16 %v523, %v522
        %v529 = vpack.c.b16 %v525, %v524
        %vm534 = vcmask 523264
        %v536 = vsel %vm534, %v509, 0
        %538 = vmatprep.subr.bf16.mxu0 0
        %539 = vmatpush1.bf16.msra.mxu0 %v526
        %540 = vmatprep.subr.bf16.mxu0 0
        %541 = vmatpush1.bf16.msra.mxu0 %v527
        %542 = vmatprep.subr.bf16.mxu0 0
        %543 = vmatpush1.bf16.msra.mxu0 %v528
        %544 = vmatprep.subr.bf16.mxu0 0
        %545 = vmatpush1.bf16.msra.mxu0 %v529
        %546 = vmatprep.subr.bf16.mxu0 0
        %547 = vmatpush1.bf16.msra.mxu0 0
        %548 = vmatprep.subr.bf16.mxu0 0
        %549 = vmatpush1.bf16.msra.mxu0 0
        %550 = vmatprep.subr.bf16.mxu0 0
        %551 = vmatpush1.bf16.msra.mxu0 0
        %552 = vmatprep.subr.bf16.mxu0 0
        %553 = vmatpush1.bf16.msra.mxu0 0
        %554 = vmatprep.subr.bf16.mxu0 0
        %555 = vmatpush1.bf16.msra.mxu0 0
        %556 = vmatprep.subr.bf16.mxu0 0
        %557 = vmatpush1.bf16.msra.mxu0 0
        %558 = vmatprep.subr.bf16.mxu0 0
        %559 = vmatpush1.bf16.msra.mxu0 0
        %560 = vmatprep.subr.bf16.mxu0 0
        %561 = vmatpush1.bf16.msra.mxu0 0
        %562 = vmatprep.subr.bf16.mxu0 0
        %563 = vmatpush1.bf16.msra.mxu0 0
        %564 = vmatprep.subr.bf16.mxu0 0
        %565 = vmatpush1.bf16.msra.mxu0 0
        %566 = vmatprep.subr.bf16.mxu0 0
        %567 = vmatpush1.bf16.msra.mxu0 0
        %568 = vmatprep.subr.bf16.mxu0 0
        %569 = vmatpush1.bf16.msra.mxu0 0
        %570 = vmatprep.mubr.bf16.mxu0 0
        %571 = vmatmul.mubr.bf16.gmra.mrb[0].mxu0 %v536
        %v572 = vpop.f32.mrb[0].mxu0
        %v573 = vadd.f32 %v503, %v572
        %v574 = vpop.f32.mrb[0].mxu0
        %v575 = vpop.f32.mrb[0].mxu0
        %v576 = vadd.f32 %v503, %v575
        %v577 = vpop.f32.mrb[0].mxu0
        %578 = vdwg.mxu0
        %v579 = vld [vmem:[#allocation2] sm:$0xff]
        %v580 = vld [vmem:[#allocation2 + $0x8] sm:$0xff]
        %581 = vmax.xlane.f32.xlu0 %v573
        %v582 = vpop.xlane.xlu0 %581
        %583 = vmax.xlane.f32.xlu0 %v576
        %v584 = vpop.xlane.xlu0 %583
        %v585 = vmax.f32 %v579, %v582
        %v586 = vmax.f32 %v580, %v584
        %v587 = vld [vmem:[#allocation3] sm:$0xff]
        %v588 = vld [vmem:[#allocation3 + $0x8] sm:$0xff]
        %v589 = vsub.f32 %v579, %v585
        %v590 = vsub.f32 %v580, %v586
        %v591 = vmul.f32 %v589, 1.442695
        %v592 = vpow.pop %v591
        %v593 = vmul.f32 %v590, 1.442695
        %v594 = vpow.pop %v593
        %v595 = vmul.f32 %v587, %v592
        %v596 = vmul.f32 %v588, %v594
        %598 = vset.pattern.permute.xlu0 0
        %599 = vperm.xlu0 %598, %v585
        %v600 = vpop.permute.xlu0 %599
        %603 = vset.pattern.permute.xlu0 0
        %604 = vperm.xlu0 %603, %v586
        %v605 = vpop.permute.xlu0 %604
        %v607 = vsub.f32 %v573, %v600
        %v608 = vsub.f32 %v576, %v605
        %v609 = vmul.f32 %v607, 1.442695
        %v610 = vpow.pop %v609
        %v611 = vmul.f32 %v608, 1.442695
        %v612 = vpow.pop %v611
        %613 = vadd.xlane.f32.xlu0 %v610
        %v614 = vpop.xlane.xlu0 %613
        %615 = vadd.xlane.f32.xlu0 %v612
        %v616 = vpop.xlane.xlu0 %615
        %v617 = vadd.f32 %v595, %v614
        %v618 = vadd.f32 %v596, %v616
        %vm619 = vcmask 7168
        %620 = vst.msk [vmem:[#allocation3] sm:$0xff] %vm619, %v617
        %621 = vst.msk [vmem:[#allocation3 + $0x8] sm:$0xff] %vm619, %v618
        %622 = vst.msk [vmem:[#allocation2] sm:$0xff] %vm619, %v585
        %623 = vst.msk [vmem:[#allocation2 + $0x8] sm:$0xff] %vm619, %v586
        %v624 = vlaneseq
        %v625 = vand.u32 %v624, 127
        %s626 = smul.u32 %s25, 128
        %v627 = vstv %s626
        %v628 = vadd.s32 %v625, %v627
        %629 = vset.pattern.permute.xlu0 0
        %630 = vperm.xlu0 %629, %v488
        %v631 = vpop.permute.xlu0 %630
        %632 = vset.pattern.permute.xlu0 0
        %633 = vperm.xlu0 %632, %v489
        %v634 = vpop.permute.xlu0 %633
        %vm635 = vcmp.eq.s32.totalorder %v628, %v631
        %vm636 = vcmp.eq.s32.totalorder %v628, %v634
        %v637 = vld [vmem:[#allocation4] sm:$0xff]
        %v638 = vld [vmem:[#allocation4 + $0x8] sm:$0xff]
        %v639 = vsel %vm635, %v573, 0.0
        %v640 = vsel %vm636, %v576, 0.0
        %641 = vadd.xlane.f32.xlu0 %v639
        %v642 = vpop.xlane.xlu0 %641
        %643 = vadd.xlane.f32.xlu0 %v640
        %v644 = vpop.xlane.xlu0 %643
        %v645 = vadd.f32 %v637, %v642
        %v646 = vadd.f32 %v638, %v644
        %647 = vst.msk [vmem:[#allocation4] sm:$0xff] %vm619, %v645
        %648 = vst.msk [vmem:[#allocation4 + $0x8] sm:$0xff] %vm619, %v646
        %p649 = scmp.eq.s32.totalorder %s25, 1
        // Predicated region
        $region90: #{bert_debias_losses.1} parent=80 // pred_check
          %p650 = pneg %p649
        $region91: #{bert_debias_losses.1} parent=80 // pred_check_branch
          %652 = sbr.rel (%p650) target = $region93
        $region92: #{bert_debias_losses.1} parent=80 // pred_region
          %v653 = vld [vmem:[#allocation2] sm:$0xff]
          %v654 = vld [vmem:[#allocation2 + $0x8] sm:$0xff]
          %v655 = vld [vmem:[#allocation3] sm:$0xff]
          %v656 = vld [vmem:[#allocation3 + $0x8] sm:$0xff]
          %v657 = vlog2.pop %v655
          %v658 = vmul.f32 %v657, 0.6931472
          %v659 = vlog2.pop %v656
          %v660 = vmul.f32 %v659, 0.6931472
          %v661 = vadd.f32 %v653, %v658
          %v662 = vadd.f32 %v654, %v660
          %v663 = vld [vmem:[#allocation4] sm:$0xff]
          %v664 = vld [vmem:[#allocation4 + $0x8] sm:$0xff]
          %v665 = vsub.f32 %v661, %v663
          %v666 = vsub.f32 %v662, %v664
          %vm667 = vcmp.ne.s32.totalorder %v488, 4294967196
          %vm668 = vcmp.ne.s32.totalorder %v489, 4294967196
          %v669 = vsel %vm667, 1, 0
          %v670 = vsel %vm668, 1, 0
          %v671 = vcvt.s32.f32 %v669
          %v672 = vcvt.s32.f32 %v670
          %v673 = vmul.f32 %v665, %v671
          %v674 = vmul.f32 %v666, %v672
          %v675 = vsel %vm619, %v673, 0.0
          %v676 = vsel %vm619, %v674, 0.0
          %v677 = vadd.f32 %v675, %v676
          %678 = vadd.xlane.f32.xlu0 %v677
          %v679 = vpop.xlane.xlu0 %678
          %v680 = vrot.slane %v679, 4
          %v681 = vadd.f32 %v679, %v680
          %v682 = vrot.slane %v681, 2
          %v683 = vadd.f32 %v681, %v682
          %v684 = vrot.slane %v683, 1
          %v685 = vadd.f32 %v683, %v684
          %s686 = vtos %v685
          %v687 = vsel %vm619, %v671, 0.0
          %v688 = vsel %vm619, %v672, 0.0
          %v689 = vadd.f32 %v687, %v688
          %690 = vadd.xlane.f32.xlu0 %v689
          %v691 = vpop.xlane.xlu0 %690
          %v692 = vrot.slane %v691, 4
          %v693 = vadd.f32 %v691, %v692
          %v694 = vrot.slane %v693, 2
          %v695 = vadd.f32 %v693, %v694
          %v696 = vrot.slane %v695, 1
          %v697 = vadd.f32 %v695, %v696
          %s698 = vtos %v697
          %v699 = vld [vmem:[%s461] sm:$0xff]
          %v700 = vld [vmem:[%s461 + $0x8] sm:$0xff]
          %v701 = vunpack.c.l.bf16 %v486
          %v702 = vunpack.c.l.bf16 %v487
          %v703 = vld [vmem:[%s3] sm:$0x1]
          %v705 = vlaneseq
          %v706 = vshrl.u32 %v705, 7
          %v707 = vsub.s32 0, %v706
          %v708 = vrot.slane %v703, %v707
          %v710 = vmul.f32 %v701, %v708
          %v711 = vmul.f32 %v702, %v708
          %v712 = vsel %vm534, %v710, 0.0
          %713 = vadd.xlane.f32.xlu0 %v712
          %v714 = vpop.xlane.xlu0 %713
          %v715 = vsel %vm534, %v711, 0.0
          %716 = vadd.xlane.f32.xlu0 %v715
          %v717 = vpop.xlane.xlu0 %716
          %v718 = vmul.f32 %v699, %v714
          %v719 = vmul.f32 %v700, %v717
          %v720 = vand.u32 2147483647, %v718
          %v721 = vand.u32 2147483647, %v719
          %v722 = vsel %vm619, %v720, 0.0
          %v723 = vsel %vm619, %v721, 0.0
          %v724 = vadd.f32 %v722, %v723
          %725 = vadd.xlane.f32.xlu0 %v724
          %v726 = vpop.xlane.xlu0 %725
          %v727 = vrot.slane %v726, 4
          %v728 = vadd.f32 %v726, %v727
          %v729 = vrot.slane %v728, 2
          %v730 = vadd.f32 %v728, %v729
          %v731 = vrot.slane %v730, 1
          %v732 = vadd.f32 %v730, %v731
          %s733 = vtos %v732
          %v734 = vstv %s686
          %735 = vst [vmem:[%s467] sm:$0x1] %v734
          %v736 = vstv %s698
          %737 = vst [vmem:[%s470] sm:$0x1] %v736
          %v738 = vstv %s733
          %739 = vst [vmem:[%s473] sm:$0x1] %v738
        $region93: #{bert_debias_losses.1} parent=80 // pred_fallthru
          _
        %p740 = scmp.lt.s32.totalorder %s24, 1
        %s741 = scalar_select %p740, %s24, 1
        %s742 = scalar_lea.vmem %s6, %s741
        %p743 = scmp.lt.s32.totalorder %s24, 1
        %s744 = scalar_select %p743, %s24, 1
        %s745 = scalar_lea.vmem %s7, %s744
        %p746 = scmp.lt.s32.totalorder %s24, 1
        %s747 = scalar_select %p746, %s24, 1
        %s748 = scalar_lea.vmem %s8, %s747
        // Predicated region
        $region94: #{bert_debias_losses.1} parent=80 // pred_check
          %p749 = pneg %p201
        $region95: #{bert_debias_losses.1} parent=80 // pred_check_branch
          %751 = sbr.rel (%p749) target = $region97
        $region96: #{bert_debias_losses.1} parent=80 // pred_region
          _
        $region97: #{bert_debias_losses.1} parent=80 // pred_fallthru
          _
        // Predicated region
        $region98: #{bert_debias_losses.1} parent=80 // pred_check
          %p752 = pneg %p227
        $region99: #{bert_debias_losses.1} parent=80 // pred_check_branch
          %754 = sbr.rel (%p752) target = $region101
        $region100: #{bert_debias_losses.1} parent=80 // pred_region
          _
        $region101: #{bert_debias_losses.1} parent=80 // pred_fallthru
          _
        // Predicated region
        $region102: #{bert_debias_losses.1} parent=80 // pred_check
          %p755 = pneg %p253
        $region103: #{bert_debias_losses.1} parent=80 // pred_check_branch
          %757 = sbr.rel (%p755) target = $region105
        $region104: #{bert_debias_losses.1} parent=80 // pred_region
          _
        $region105: #{bert_debias_losses.1} parent=80 // pred_fallthru
          _
      $region81: #{bert_debias_losses.1} parent=5 // pred_fallthru
        _
      %p758 = scmp.le.s32.totalorder 2, %s15
      // Predicated region
      $region106: #{bert_debias_losses.1} parent=5 // pred_check
        %p759 = pneg %p758
      $region107: #{bert_debias_losses.1} parent=5 // pred_check_branch
        %761 = sbr.rel (%p759) target = $region109
      $region108: #{bert_debias_losses.1} parent=5 // pred_region
        %s762 = ssub.s32 %s15, 2
        // Predicated region
        $region110: #{bert_debias_losses.1} parent=108 // pred_check
          %p763 = pneg %p207
        $region111: #{bert_debias_losses.1} parent=108 // pred_check_branch
          %765 = sbr.rel (%p763) target = $region113
        $region112: #{bert_debias_losses.1} parent=108 // pred_region
          %p766 = scmp.lt.s32.totalorder %s26, 1
          %s767 = scalar_select %p766, %s26, 1
          %s768 = scalar_lea.vmem %s6, %s767
        $region113: #{bert_debias_losses.1} parent=108 // pred_fallthru
          _
        // Predicated region
        $region114: #{bert_debias_losses.1} parent=108 // pred_check
          %p769 = pneg %p233
        $region115: #{bert_debias_losses.1} parent=108 // pred_check_branch
          %771 = sbr.rel (%p769) target = $region117
        $region116: #{bert_debias_losses.1} parent=108 // pred_region
          %p772 = scmp.lt.s32.totalorder %s26, 1
          %s773 = scalar_select %p772, %s26, 1
          %s774 = scalar_lea.vmem %s7, %s773
        $region117: #{bert_debias_losses.1} parent=108 // pred_fallthru
          _
        // Predicated region
        $region118: #{bert_debias_losses.1} parent=108 // pred_check
          %p775 = pneg %p259
        $region119: #{bert_debias_losses.1} parent=108 // pred_check_branch
          %777 = sbr.rel (%p775) target = $region121
        $region120: #{bert_debias_losses.1} parent=108 // pred_region
          %p778 = scmp.lt.s32.totalorder %s26, 1
          %s779 = scalar_select %p778, %s26, 1
          %s780 = scalar_lea.vmem %s8, %s779
        $region121: #{bert_debias_losses.1} parent=108 // pred_fallthru
          _
      $region109: #{bert_debias_losses.1} parent=5 // pred_fallthru
        _
    $region6: #{bert_debias_losses.1} parent=1 // loop_footer
      %s19 = sadd.s32 1, %s15
    $region7: #{bert_debias_losses.1} parent=1 // loop_footer_branch
      %14 = sbr.rel target = $region3
    $region8: #{bert_debias_losses.1} parent=1 // loop_exit
      _

</llo_original>
